<compile_context>
chip_gen: v6e
topology: v6e:2x2x1
jax: 0.10.0
libtpu: 0.0.40
codegen_flags: <defaults>
</compile_context>

<pallas_src>
import functools

import jax
import jax.numpy as jnp
from jax.experimental import pallas as pl
from jax.experimental.pallas import tpu as pltpu

BN_EPS = 1e-5
LEAKY_SLOPE = 0.01
HID = 32          # hidden width of the GIN MLP (fixed by the module)
LANE = 128        # TPU lane width


def _round_up(v, m):
    return (v + m - 1) // m * m


def _pad2(a, rows, cols):
    return jnp.pad(a, ((0, rows - a.shape[0]), (0, cols - a.shape[1])))


def _choose_tm(n_pad):
    # Largest row tile from {512, 256, 128} that divides n_pad and still gives
    # a pipelined grid of >= 2 steps (n_pad is always a multiple of 128).
    for t in (512, 256, 128):
        if n_pad % t == 0 and n_pad // t >= 2:
            return t
    return 128


def _compiler_params(*buf_bytes):
    # Size the scoped VMEM limit from the tiles (double-buffered) instead of
    # relying on the 16/32 MiB defaults; keep under v7x's 64 MiB physical VMEM.
    need = 2 * sum(int(b) for b in buf_bytes) + (2 << 20)
    limit = int(min(max(need, 8 << 20), 48 << 20))
    return pltpu.CompilerParams(
        dimension_semantics=("parallel",),
        vmem_limit_bytes=limit,
    )


# --------------------------- kernels ---------------------------------------


def _agg_mlp1_kernel(adj_ref, x_ref, w1_ref, b1_ref, z1_ref, st_ref, *, n_real, tm):
    i = pl.program_id(0)
    # Aggregation for this row tile: rows of (A + I) @ x.  adj is stored in
    # bfloat16 (0/1 entries are exact) purely to halve HBM traffic of the
    # dominant matmul; cast up and accumulate in f32.
    agg = jnp.dot(adj_ref[...].astype(jnp.float32), x_ref[...],
                  preferred_element_type=jnp.float32)
    # Linear(d_in, 32) + ReLU (lane-padded to 128)
    z1 = jnp.dot(agg, w1_ref[...], preferred_element_type=jnp.float32) + b1_ref[...]
    z1 = jnp.maximum(z1, 0.0)
    z1_ref[...] = z1
    # One-pass partial BN1 statistics over the *real* rows of this tile.
    rows = jax.lax.broadcasted_iota(jnp.int32, z1.shape, 0) + i * tm
    zm = jnp.where(rows < n_real, z1, 0.0)
    s = jnp.sum(zm, axis=0, keepdims=True)
    ss = jnp.sum(zm * zm, axis=0, keepdims=True)
    ridx = jax.lax.broadcasted_iota(jnp.int32, (8, z1.shape[1]), 0)
    st_ref[...] = jnp.where(ridx == 0, s, jnp.where(ridx == 1, ss, 0.0))[None]


def _bn1_mlp2_kernel(z1_ref, sc1_ref, sh1_ref, w2_ref, b2_ref, z2_ref, st_ref, *,
                     n_real, tm):
    i = pl.program_id(0)
    z1n = z1_ref[...] * sc1_ref[...] + sh1_ref[...]          # folded BN1 affine
    z2 = jnp.dot(z1n, w2_ref[...], preferred_element_type=jnp.float32) + b2_ref[...]
    z2_ref[...] = z2
    rows = jax.lax.broadcasted_iota(jnp.int32, z2.shape, 0) + i * tm
    zm = jnp.where(rows < n_real, z2, 0.0)
    s = jnp.sum(zm, axis=0, keepdims=True)
    ss = jnp.sum(zm * zm, axis=0, keepdims=True)
    ridx = jax.lax.broadcasted_iota(jnp.int32, (8, z2.shape[1]), 0)
    st_ref[...] = jnp.where(ridx == 0, s, jnp.where(ridx == 1, ss, 0.0))[None]


def _bn2_act_kernel(z2_ref, sc2_ref, sh2_ref, out_ref):
    y = z2_ref[...] * sc2_ref[...] + sh2_ref[...]            # folded BN2 affine
    out_ref[...] = jnp.where(y > 0, y, LEAKY_SLOPE * y)      # LeakyReLU(0.01)


# --------------------------- layer wrapper ----------------------------------


def _finalize_bn(stats, gamma_p, beta_p, n_real):
    """Reduce per-tile (sum, sumsq) partials into a folded BN affine."""
    s = jnp.sum(stats[:, 0, :], axis=0)
    ss = jnp.sum(stats[:, 1, :], axis=0)
    mean = s / n_real
    var = jnp.maximum(ss / n_real - mean * mean, 0.0)        # biased variance
    scale = gamma_p * jax.lax.rsqrt(var + BN_EPS)[None, :]
    shift = beta_p - mean[None, :] * scale
    return scale, shift


def gin_layer(adj_eff, x_p, p, n_real, tm):
    n_pad, f_pad = x_p.shape
    hid_pad = _round_up(HID, LANE)
    out_dim = p["w2"].shape[1]
    o_pad = _round_up(out_dim, LANE)
    nt = n_pad // tm
    f32 = jnp.float32

    # Zero-pad parameters to 128-lane multiples (padded lanes stay exactly 0).
    w1p = _pad2(p["w1"], f_pad, hid_pad)
    b1p = _pad2(p["b1"], 1, hid_pad)
    g1p = _pad2(p["g1"], 1, hid_pad)
    be1p = _pad2(p["be1"], 1, hid_pad)
    w2p = _pad2(p["w2"], hid_pad, o_pad)
    b2p = _pad2(p["b2"], 1, o_pad)
    g2p = _pad2(p["g2"], 1, o_pad)
    be2p = _pad2(p["be2"], 1, o_pad)

    # --- call 1: aggregation + Linear1 + ReLU + partial BN1 stats ------------
    # NOTE: for very large N, additionally tile the adjacency columns
    # (reduction grid axis + VMEM accumulator). A (TM, N) row tile suffices
    # here and keeps the adj DMA fully double-buffered against the MXU.
    z1, st1 = pl.pallas_call(
        functools.partial(_agg_mlp1_kernel, n_real=n_real, tm=tm),
        grid=(nt,),
        in_specs=[
            pl.BlockSpec((tm, n_pad), lambda i: (i, 0)),       # adj row tile (bf16)
            pl.BlockSpec((n_pad, f_pad), lambda i: (0, 0)),    # x, full
            pl.BlockSpec((f_pad, hid_pad), lambda i: (0, 0)),  # W1
            pl.BlockSpec((1, hid_pad), lambda i: (0, 0)),      # b1
        ],
        out_specs=[
            pl.BlockSpec((tm, hid_pad), lambda i: (i, 0)),
            pl.BlockSpec((1, 8, hid_pad), lambda i: (i, 0, 0)),
        ],
        out_shape=[
            jax.ShapeDtypeStruct((n_pad, hid_pad), f32),
            jax.ShapeDtypeStruct((nt, 8, hid_pad), f32),
        ],
        compiler_params=_compiler_params(
            tm * n_pad * 2, n_pad * f_pad * 4, f_pad * hid_pad * 4,
            hid_pad * 4, tm * hid_pad * 4, 8 * hid_pad * 4),
    )(adj_eff, x_p, w1p, b1p)

    scale1, shift1 = _finalize_bn(st1, g1p, be1p, n_real)

    # --- call 2: BN1 (folded affine) + Linear2 + partial BN2 stats -----------
    z2, st2 = pl.pallas_call(
        functools.partial(_bn1_mlp2_kernel, n_real=n_real, tm=tm),
        grid=(nt,),
        in_specs=[
            pl.BlockSpec((tm, hid_pad), lambda i: (i, 0)),
            pl.BlockSpec((1, hid_pad), lambda i: (0, 0)),
            pl.BlockSpec((1, hid_pad), lambda i: (0, 0)),
            pl.BlockSpec((hid_pad, o_pad), lambda i: (0, 0)),
            pl.BlockSpec((1, o_pad), lambda i: (0, 0)),
        ],
        out_specs=[
            pl.BlockSpec((tm, o_pad), lambda i: (i, 0)),
            pl.BlockSpec((1, 8, o_pad), lambda i: (i, 0, 0)),
        ],
        out_shape=[
            jax.ShapeDtypeStruct((n_pad, o_pad), f32),
            jax.ShapeDtypeStruct((nt, 8, o_pad), f32),
        ],
        compiler_params=_compiler_params(
            tm * hid_pad * 4, 2 * hid_pad * 4, hid_pad * o_pad * 4,
            o_pad * 4, tm * o_pad * 4, 8 * o_pad * 4),
    )(z1, scale1, shift1, w2p, b2p)

    scale2, shift2 = _finalize_bn(st2, g2p, be2p, n_real)

    # --- call 3: BN2 (folded affine) + LeakyReLU ------------------------------
    out = pl.pallas_call(
        _bn2_act_kernel,
        grid=(nt,),
        in_specs=[
            pl.BlockSpec((tm, o_pad), lambda i: (i, 0)),
            pl.BlockSpec((1, o_pad), lambda i: (0, 0)),
            pl.BlockSpec((1, o_pad), lambda i: (0, 0)),
        ],
        out_specs=pl.BlockSpec((tm, o_pad), lambda i: (i, 0)),
        out_shape=jax.ShapeDtypeStruct((n_pad, o_pad), f32),
        compiler_params=_compiler_params(2 * tm * o_pad * 4, 2 * o_pad * 4),
    )(z2, scale2, shift2)

    return out


def gin_forward(adj, x, params):
    n, f = x.shape
    n_pad = _round_up(n, LANE)
    tm = _choose_tm(n_pad)
    f_pad = _round_up(f, LANE)

    # Fold the self term ((1+eps)*x, eps=0) into the adjacency: A_eff = A + I.
    # 0/1 entries are exact in bfloat16; bf16 halves the HBM bytes of the
    # bandwidth-bound aggregation matmul (f32 accumulation in the kernel).
    adj_eff = _pad2(adj + jnp.eye(n, dtype=adj.dtype), n_pad, n_pad)
    adj_eff = adj_eff.astype(jnp.bfloat16)
    x_p = _pad2(x.astype(jnp.float32), n_pad, f_pad)

    for p in params:
        x_p = gin_layer(adj_eff, x_p, p, n, tm)

    out_dim = params[-1]["w2"].shape[1]
    return x_p[:n, :out_dim]


# --------------------------- params & reference -----------------------------


def init_gin_params(key, in_feature, layers):
    """Deterministic parameter init matching the module's shapes."""
    dims = [in_feature] + list(layers)
    params = []
    for i in range(len(dims) - 1):
        d_in, d_out, hidden = dims[i], dims[i + 1], HID
        key, k1, k2, k3, k4 = jax.random.split(key, 5)
        bound1 = 1.0 / jnp.sqrt(d_in)
        bound2 = 1.0 / jnp.sqrt(hidden)
        p = {
            # Linear(d_in, 32): stored as (d_in, 32) so x @ W matches x @ W_t^T
            "w1": jax.random.uniform(k1, (d_in, hidden), jnp.float32, -bound1, bound1),
            "b1": jax.random.uniform(k2, (1, hidden), jnp.float32, -bound1, bound1),
            "g1": jnp.ones((1, hidden), jnp.float32),
            "be1": jnp.zeros((1, hidden), jnp.float32),
            # Linear(32, d_out)
            "w2": jax.random.uniform(k3, (hidden, d_out), jnp.float32, -bound2, bound2),
            "b2": jax.random.uniform(k4, (1, d_out), jnp.float32, -bound2, bound2),
            "g2": jnp.ones((1, d_out), jnp.float32),
            "be2": jnp.zeros((1, d_out), jnp.float32),
        }
        params.append(p)
    return params


def gin_reference(adj, x, params):
    """Pure-JAX reference for sanity checking."""
    for p in params:
        h = x + adj @ x
        z = jnp.maximum(h @ p["w1"] + p["b1"], 0.0)
        m, v = jnp.mean(z, 0, keepdims=True), jnp.var(z, 0, keepdims=True)
        z = (z - m) / jnp.sqrt(v + BN_EPS) * p["g1"] + p["be1"]
        z = z @ p["w2"] + p["b2"]
        m, v = jnp.mean(z, 0, keepdims=True), jnp.var(z, 0, keepdims=True)
        z = (z - m) / jnp.sqrt(v + BN_EPS) * p["g2"] + p["be2"]
        x = jnp.where(z > 0, z, LEAKY_SLOPE * z)
    return x


if __name__ == "__main__":
    key = jax.random.PRNGKey(0)
    k_adj, k_x, k_p = jax.random.split(key, 3)

    N = 256            # number of graph nodes -> 2 row tiles of 128
    in_feature = 16    # input feature size
    layers = [64, 64]  # two GINConv layers (exercises layer chaining)

    # Dense, symmetric 0/1 adjacency (no self loops; the kernel folds + I).
    a = (jax.random.uniform(k_adj, (N, N)) < 0.05).astype(jnp.float32)
    adj = jnp.maximum(a, a.T) * (1.0 - jnp.eye(N, dtype=jnp.float32))

    x = jax.random.normal(k_x, (N, in_feature), jnp.float32)
    params = init_gin_params(k_p, in_feature, layers)

    out = gin_forward(adj, x, params)
    jax.block_until_ready(out)

    ref = gin_reference(adj, x, params)
    assert out.shape == (N, layers[-1])
    err = float(jnp.max(jnp.abs(out - ref)))
    assert jnp.allclose(out, ref, atol=1e-3, rtol=1e-3), err

    print("KERNEL_OK")
</pallas_src>

<mosaic_0001>
module attributes {stable_mosaic.version = 11 : i64} {
  func.func @_agg_mlp1_kernel(%arg0: i32, %arg1: memref<128x256xbf16, #tpu.memory_space<vmem>>, %arg2: memref<256x128xf32, #tpu.memory_space<vmem>>, %arg3: memref<128x128xf32, #tpu.memory_space<vmem>>, %arg4: memref<1x128xf32, #tpu.memory_space<vmem>>, %arg5: memref<128x128xf32, #tpu.memory_space<vmem>>, %arg6: memref<1x8x128xf32, #tpu.memory_space<vmem>>) attributes {dimension_semantics = [#tpu.dimension_semantics<parallel>], iteration_bounds = array<i64: 2>, scalar_prefetch = 0 : i64, scratch_operands = 0 : i64, tpu.core_type = #tpu.core_type<tc>, window_params = [{transform_indices = @transform_0, window_bounds = array<i64: 128, 256>}, {pipeline_mode = #tpu.pipeline_mode<synchronous>, transform_indices = @transform_1, window_bounds = array<i64: 256, 128>}, {pipeline_mode = #tpu.pipeline_mode<synchronous>, transform_indices = @transform_2, window_bounds = array<i64: 128, 128>}, {pipeline_mode = #tpu.pipeline_mode<synchronous>, transform_indices = @transform_3, window_bounds = array<i64: 1, 128>}, {transform_indices = @transform_4, window_bounds = array<i64: 128, 128>}, {transform_indices = @transform_5, window_bounds = array<i64: 1, 8, 128>}]} {
    %c0 = arith.constant 0 : index
    %c0_0 = arith.constant 0 : index
    %0 = vector.load %arg1[%c0, %c0_0] : memref<128x256xbf16, #tpu.memory_space<vmem>>, vector<128x256xbf16>
    %1 = arith.extf %0 : vector<128x256xbf16> to vector<128x256xf32>
    %c0_1 = arith.constant 0 : index
    %c0_2 = arith.constant 0 : index
    %2 = vector.load %arg2[%c0_1, %c0_2] : memref<256x128xf32, #tpu.memory_space<vmem>>, vector<256x128xf32>
    %cst = arith.constant dense<0.000000e+00> : vector<128x128xf32>
    %3 = tpu.matmul %1, %2, %cst {dimension_numbers = #tpu.dot_dimension_numbers<[1], [0], [0], [1], [0, 0, 1, 1], [], []>} : vector<128x256xf32>, vector<256x128xf32>, vector<128x128xf32> -> vector<128x128xf32>
    %c0_3 = arith.constant 0 : index
    %c0_4 = arith.constant 0 : index
    %4 = vector.load %arg3[%c0_3, %c0_4] : memref<128x128xf32, #tpu.memory_space<vmem>>, vector<128x128xf32>
    %cst_5 = arith.constant dense<0.000000e+00> : vector<128x128xf32>
    %5 = tpu.matmul %3, %4, %cst_5 {dimension_numbers = #tpu.dot_dimension_numbers<[1], [0], [0], [1], [0, 0, 1, 1], [], []>} : vector<128x128xf32>, vector<128x128xf32>, vector<128x128xf32> -> vector<128x128xf32>
    %c0_6 = arith.constant 0 : index
    %c0_7 = arith.constant 0 : index
    %6 = vector.load %arg4[%c0_6, %c0_7] : memref<1x128xf32, #tpu.memory_space<vmem>>, vector<1x128xf32>
    %7 = vector.broadcast %6 : vector<1x128xf32> to vector<128x128xf32>
    %8 = arith.addf %5, %7 : vector<128x128xf32>
    %cst_8 = arith.constant 0.000000e+00 : f32
    %9 = vector.broadcast %cst_8 : f32 to vector<128x128xf32>
    %10 = arith.maximumf %8, %9 : vector<128x128xf32>
    %c0_9 = arith.constant 0 : index
    %c0_10 = arith.constant 0 : index
    %11 = vector.load %arg5[%c0_9, %c0_10] : memref<128x128xf32, #tpu.memory_space<vmem>>, vector<128x128xf32>
    tpu.vector_store %arg5[%c0_9, %c0_10], %10 {strides = array<i32>} : memref<128x128xf32, #tpu.memory_space<vmem>>, vector<128x128xf32>,
    %12 = tpu.iota {dimensions = array<i32: 0>} : vector<128x128xi32>
    %c128_i32 = arith.constant 128 : i32
    %13 = arith.muli %arg0, %c128_i32 : i32
    %14 = vector.broadcast %13 : i32 to vector<128x128xi32>
    %15 = arith.addi %12, %14 : vector<128x128xi32>
    %c256_i32 = arith.constant 256 : i32
    %16 = vector.broadcast %c256_i32 : i32 to vector<128x128xi32>
    %17 = arith.cmpi slt, %15, %16 : vector<128x128xi32>
    %cst_11 = arith.constant 0.000000e+00 : f32
    %18 = vector.broadcast %cst_11 : f32 to vector<128x128xf32>
    %19 = arith.select %17, %10, %18 : vector<128x128xi1>, vector<128x128xf32>
    %cst_12 = arith.constant dense<0.000000e+00> : vector<128xf32>
    %20 = vector.multi_reduction <add>, %19, %cst_12 [0] : vector<128x128xf32> to vector<128xf32>
    %21 = vector.shape_cast %20 : vector<128xf32> to vector<1x128xf32>
    %22 = arith.mulf %19, %19 : vector<128x128xf32>
    %cst_13 = arith.constant dense<0.000000e+00> : vector<128xf32>
    %23 = vector.multi_reduction <add>, %22, %cst_13 [0] : vector<128x128xf32> to vector<128xf32>
    %24 = vector.shape_cast %23 : vector<128xf32> to vector<1x128xf32>
    %25 = tpu.iota {dimensions = array<i32: 0>} : vector<8x128xi32>
    %c0_i32 = arith.constant 0 : i32
    %26 = vector.broadcast %c0_i32 : i32 to vector<8x128xi32>
    %27 = arith.cmpi eq, %25, %26 : vector<8x128xi32>
    %c1_i32 = arith.constant 1 : i32
    %28 = vector.broadcast %c1_i32 : i32 to vector<8x128xi32>
    %29 = arith.cmpi eq, %25, %28 : vector<8x128xi32>
    %cst_14 = arith.constant 0.000000e+00 : f32
    %30 = vector.shape_cast %24 : vector<1x128xf32> to vector<1x128xf32>
    %31 = vector.broadcast %30 : vector<1x128xf32> to vector<8x128xf32>
    %32 = vector.broadcast %cst_14 : f32 to vector<8x128xf32>
    %33 = arith.select %29, %31, %32 : vector<8x128xi1>, vector<8x128xf32>
    %34 = vector.shape_cast %21 : vector<1x128xf32> to vector<1x128xf32>
    %35 = vector.broadcast %34 : vector<1x128xf32> to vector<8x128xf32>
    %36 = arith.select %27, %35, %33 : vector<8x128xi1>, vector<8x128xf32>
    %37 = vector.shape_cast %36 : vector<8x128xf32> to vector<1x8x128xf32>
    %c0_15 = arith.constant 0 : index
    %c0_16 = arith.constant 0 : index
    %c0_17 = arith.constant 0 : index
    %38 = vector.load %arg6[%c0_15, %c0_16, %c0_17] : memref<1x8x128xf32, #tpu.memory_space<vmem>>, vector<1x8x128xf32>
    tpu.vector_store %arg6[%c0_15, %c0_16, %c0_17], %37 {strides = array<i32>} : memref<1x8x128xf32, #tpu.memory_space<vmem>>, vector<1x8x128xf32>,
    return
  }
  func.func @transform_0(%arg0: i32) -> (i32, i32) {
    %c0_i32 = arith.constant 0 : i32
    %c0_i32_0 = arith.constant 0 : i32
    return %arg0, %c0_i32 : i32, i32
  }
  func.func @transform_1(%arg0: i32) -> (i32, i32) {
    %c0_i32 = arith.constant 0 : i32
    %c0_i32_0 = arith.constant 0 : i32
    %c0_i32_1 = arith.constant 0 : i32
    return %c0_i32, %c0_i32_0 : i32, i32
  }
  func.func @transform_2(%arg0: i32) -> (i32, i32) {
    %c0_i32 = arith.constant 0 : i32
    %c0_i32_0 = arith.constant 0 : i32
    %c0_i32_1 = arith.constant 0 : i32
    return %c0_i32, %c0_i32_0 : i32, i32
  }
  func.func @transform_3(%arg0: i32) -> (i32, i32) {
    %c0_i32 = arith.constant 0 : i32
    %c0_i32_0 = arith.constant 0 : i32
    %c0_i32_1 = arith.constant 0 : i32
    return %c0_i32, %c0_i32_0 : i32, i32
  }
  func.func @transform_4(%arg0: i32) -> (i32, i32) {
    %c0_i32 = arith.constant 0 : i32
    %c0_i32_0 = arith.constant 0 : i32
    return %arg0, %c0_i32 : i32, i32
  }
  func.func @transform_5(%arg0: i32) -> (i32, i32, i32) {
    %c0_i32 = arith.constant 0 : i32
    %c0_i32_0 = arith.constant 0 : i32
    %c0_i32_1 = arith.constant 0 : i32
    return %arg0, %c0_i32, %c0_i32_0 : i32, i32, i32
  }
}

</mosaic_0001>

<llo_original>
// kernel: tpu_custom_call.1
$region0: #{tpu_custom_call.1}
  #allocation0 [shape = 'u32[]', space=smem, size = 0x4, offset = 0x4, fixed_abs, tag = 'smem constant byte address 0x4 - core index']
  #allocation1 [shape = 'u32[144,128]{1,0:T(1,128)}', space=vmem, size = 0x12000, scoped, tag = 'internal scratch']
  %s0 = inlined_call_operand.hbm [shape: bf16[256,256], index: 0, kind: input, shape index: {}]
  %s1 = inlined_call_operand.hbm [shape: f32[256,128], index: 1, kind: input, shape index: {}]
  %s2 = inlined_call_operand.hbm [shape: f32[128,128], index: 2, kind: input, shape index: {}]
  %s3 = inlined_call_operand.vmem [shape: f32[1,128], index: 3, kind: input, shape index: {}]
  %s4 = inlined_call_operand.hbm [shape: f32[256,128], index: 4, kind: output, shape index: {0}]
  %s5 = inlined_call_operand.hbm [shape: f32[2,8,128], index: 5, kind: output, shape index: {1}]
  %6 = xla_tuple %s4, %s5
  %s7 = sld [smem:[#allocation0]]
  $region69: #{tpu_custom_call.1} parent=0
    _
  %s9 = ssub.s32 1, %s7
  %s10 = scalar_select 0, %s9, %s7
  $region1: #{tpu_custom_call.1} parent=0
    #allocation2 [shape = 'u8[131072]{0}', space=vmem, size = 0x20000, scoped, tag = 'input window, operand 0']
    #allocation3 [shape = 's32[2]{0}', space=sflag, size = 0x8, scoped, tag = 'scoped memory for tpu_custom_call.1']
    #allocation4 [shape = 's32[2]{0}', space=sflag, size = 0x8, scoped, tag = 'scoped memory for tpu_custom_call.1']
    #allocation5 [shape = 'u8[131072]{0}', space=vmem, size = 0x20000, scoped, tag = 'input window, operand 1, single buffered']
    #allocation6 [shape = 's32[1]{0}', space=sflag, size = 0x4, scoped, tag = 'scoped memory for tpu_custom_call.1']
    #allocation7 [shape = 'u8[65536]{0}', space=vmem, size = 0x10000, scoped, tag = 'input window, operand 2, single buffered']
    #allocation8 [shape = 'u8[131072]{0}', space=vmem, size = 0x20000, scoped, tag = 'output window, operand 0']
    #allocation9 [shape = 'u8[8192]{0}', space=vmem, size = 0x2000, scoped, tag = 'output window, operand 1']
    #allocation10 [shape = 's32[2]{0}', space=sflag, size = 0x8, scoped, tag = 'scoped memory for tpu_custom_call.1']
    %11 = vsyncpa [#allocation3], 0
    %s12 = scalar_lea.sflag [#allocation3], 1
    %13 = vsyncpa %s12, 0
    %14 = vsyncpa [#allocation6], 0
    %15 = vsyncpa [#allocation4], 0
    %s16 = scalar_lea.sflag [#allocation4], 1
    %17 = vsyncpa %s16, 0
    %18 = vsyncpa [#allocation10], 0
    %s19 = scalar_lea.sflag [#allocation10], 1
    %20 = vsyncpa %s19, 0
    loop: start=0, step=1, limit=4
    $region2: #{tpu_custom_call.1} parent=1 // loop_pre_header
      _
    $region3: #{tpu_custom_call.1} parent=1 // loop_header
      %s22 = sphi 0, %s26
      %p23 = scmp.ge.s32.totalorder %s22, 4
      %s32 = sphi 0, %s34
      %s35 = sphi 0, %s32
      %s36 = sphi 0, %s35
      %s52 = sphi 0, %s36
      %s56 = sphi 0, %s56
      %s58 = sphi 0, %s56
      %s59 = sphi 0, %s58
      %s73 = sphi 0, %s59
      %s77 = sphi 0, %s77
      %s79 = sphi 0, %s77
      %s80 = sphi 0, %s79
      %s94 = sphi 0, %s80
      %s98 = sphi 0, %s98
      %s100 = sphi 0, %s98
      %s101 = sphi 0, %s100
      %s115 = sphi 0, %s101
      %s121 = sphi 0, %s123
      %s124 = sphi 0, %s121
      %s125 = sphi 0, %s124
      %s141 = sphi 0, %s125
      %s147 = sphi 0, %s149
      %s150 = sphi 0, %s147
      %s151 = sphi 0, %s150
      %s167 = sphi 0, %s151
    $region4: #{tpu_custom_call.1} parent=1 // loop_header_branch
      %25 = sbr.rel (%p23) target = $region8
    $region5: #{tpu_custom_call.1} parent=1 // loop_body
      %s27 = ssub.s32 %s22, 1
      %s28 = ssub.s32 %s22, 2
      %s29 = sadd.s32 %s22, 1
      %s30 = ssub.s32 %s22, %s29
      %p31 = scmp.eq.s32.totalorder %s30, 0
      %s33 = sadd.s32 %s32, 1
      %s34 = scalar_select %p31, %s32, %s33
      %p37 = pneg %p31
      %p38 = scmp.eq.s32.totalorder %s22, 1
      %p39 = por %p37, %p38
      %p40 = scmp.ne.s32.totalorder %s32, %s35
      %p41 = scmp.eq.s32.totalorder %s22, 0
      %p42 = por %p40, %p41
      %p43 = scmp.ne.s32.totalorder %s32, %s35
      %p44 = scmp.eq.s32.totalorder %s27, 1
      %p45 = por %p43, %p44
      %p46 = scmp.ne.s32.totalorder %s35, %s36
      %p47 = scmp.eq.s32.totalorder %s27, 0
      %p48 = por %p46, %p47
      %p49 = scmp.ne.s32.totalorder %s35, %s36
      %p50 = scmp.eq.s32.totalorder %s28, 1
      %p51 = por %p49, %p50
      %p53 = scmp.ne.s32.totalorder %s36, %s52
      %p54 = scmp.eq.s32.totalorder %s28, 0
      %p55 = por %p53, %p54
      %s57 = sadd.s32 %s56, 1
      %p60 = scmp.eq.s32.totalorder %s22, 1
      %p61 = scmp.ne.s32.totalorder %s56, %s58
      %p62 = scmp.eq.s32.totalorder %s22, 0
      %p63 = por %p61, %p62
      %p64 = scmp.ne.s32.totalorder %s56, %s58
      %p65 = scmp.eq.s32.totalorder %s27, 1
      %p66 = por %p64, %p65
      %p67 = scmp.ne.s32.totalorder %s58, %s59
      %p68 = scmp.eq.s32.totalorder %s27, 0
      %p69 = por %p67, %p68
      %p70 = scmp.ne.s32.totalorder %s58, %s59
      %p71 = scmp.eq.s32.totalorder %s28, 1
      %p72 = por %p70, %p71
      %p74 = scmp.ne.s32.totalorder %s59, %s73
      %p75 = scmp.eq.s32.totalorder %s28, 0
      %p76 = por %p74, %p75
      %s78 = sadd.s32 %s77, 1
      %p81 = scmp.eq.s32.totalorder %s22, 1
      %p82 = scmp.ne.s32.totalorder %s77, %s79
      %p83 = scmp.eq.s32.totalorder %s22, 0
      %p84 = por %p82, %p83
      %p85 = scmp.ne.s32.totalorder %s77, %s79
      %p86 = scmp.eq.s32.totalorder %s27, 1
      %p87 = por %p85, %p86
      %p88 = scmp.ne.s32.totalorder %s79, %s80
      %p89 = scmp.eq.s32.totalorder %s27, 0
      %p90 = por %p88, %p89
      %p91 = scmp.ne.s32.totalorder %s79, %s80
      %p92 = scmp.eq.s32.totalorder %s28, 1
      %p93 = por %p91, %p92
      %p95 = scmp.ne.s32.totalorder %s80, %s94
      %p96 = scmp.eq.s32.totalorder %s28, 0
      %p97 = por %p95, %p96
      %s99 = sadd.s32 %s98, 1
      %p102 = scmp.eq.s32.totalorder %s22, 1
      %p103 = scmp.ne.s32.totalorder %s98, %s100
      %p104 = scmp.eq.s32.totalorder %s22, 0
      %p105 = por %p103, %p104
      %p106 = scmp.ne.s32.totalorder %s98, %s100
      %p107 = scmp.eq.s32.totalorder %s27, 1
      %p108 = por %p106, %p107
      %p109 = scmp.ne.s32.totalorder %s100, %s101
      %p110 = scmp.eq.s32.totalorder %s27, 0
      %p111 = por %p109, %p110
      %p112 = scmp.ne.s32.totalorder %s100, %s101
      %p113 = scmp.eq.s32.totalorder %s28, 1
      %p114 = por %p112, %p113
      %p116 = scmp.ne.s32.totalorder %s101, %s115
      %p117 = scmp.eq.s32.totalorder %s28, 0
      %p118 = por %p116, %p117
      %s119 = ssub.s32 %s22, %s29
      %p120 = scmp.eq.s32.totalorder %s119, 0
      %s122 = sadd.s32 %s121, 1
      %s123 = scalar_select %p120, %s121, %s122
      %p126 = pneg %p120
      %p127 = scmp.eq.s32.totalorder %s22, 1
      %p128 = por %p126, %p127
      %p129 = scmp.ne.s32.totalorder %s121, %s124
      %p130 = scmp.eq.s32.totalorder %s22, 0
      %p131 = por %p129, %p130
      %p132 = scmp.ne.s32.totalorder %s121, %s124
      %p133 = scmp.eq.s32.totalorder %s27, 1
      %p134 = por %p132, %p133
      %p135 = scmp.ne.s32.totalorder %s124, %s125
      %p136 = scmp.eq.s32.totalorder %s27, 0
      %p137 = por %p135, %p136
      %p138 = scmp.ne.s32.totalorder %s124, %s125
      %p139 = scmp.eq.s32.totalorder %s28, 1
      %p140 = por %p138, %p139
      %p142 = scmp.ne.s32.totalorder %s125, %s141
      %p143 = scmp.eq.s32.totalorder %s28, 0
      %p144 = por %p142, %p143
      %s145 = ssub.s32 %s22, %s29
      %p146 = scmp.eq.s32.totalorder %s145, 0
      %s148 = sadd.s32 %s147, 1
      %s149 = scalar_select %p146, %s147, %s148
      %p152 = pneg %p146
      %p153 = scmp.eq.s32.totalorder %s22, 1
      %p154 = por %p152, %p153
      %p155 = scmp.ne.s32.totalorder %s147, %s150
      %p156 = scmp.eq.s32.totalorder %s22, 0
      %p157 = por %p155, %p156
      %p158 = scmp.ne.s32.totalorder %s147, %s150
      %p159 = scmp.eq.s32.totalorder %s27, 1
      %p160 = por %p158, %p159
      %p161 = scmp.ne.s32.totalorder %s150, %s151
      %p162 = scmp.eq.s32.totalorder %s27, 0
      %p163 = por %p161, %p162
      %p164 = scmp.ne.s32.totalorder %s150, %s151
      %p165 = scmp.eq.s32.totalorder %s28, 1
      %p166 = por %p164, %p165
      %p168 = scmp.ne.s32.totalorder %s151, %s167
      %p169 = scmp.eq.s32.totalorder %s28, 0
      %p170 = por %p168, %p169
      %p171 = scmp.le.s32.totalorder 1, %s22
      %p172 = scmp.lt.s32.totalorder %s22, 3
      %p173 = pnand %p171, %p172
      %p174 = pneg %p173
      // Predicated region
      $region9: #{tpu_custom_call.1} parent=5 // pred_check
        _
      $region10: #{tpu_custom_call.1} parent=5 // pred_check_branch
        %176 = sbr.rel (%p173) target = $region12
      $region11: #{tpu_custom_call.1} parent=5 // pred_region
        %s177 = ssub.s32 %s22, 1
        // Predicated region
        $region13: #{tpu_custom_call.1} parent=11 // pred_check
          %p178 = pneg %p69
        $region14: #{tpu_custom_call.1} parent=11 // pred_check_branch
          %180 = sbr.rel (%p178) target = $region16
        $region15: #{tpu_custom_call.1} parent=11 // pred_region
          %s182 = ssub.s32 4096, 4096
          %183 = vsyncadd [#allocation6], %s182
          %s184 = sshll.u32 [#allocation5], 4
          %s185 = int_to_ptr.vmem [resolvable:$true] %s184
          %190 = dma.hbm_to_vmem [thread:$0]  %s1, 4096, %s185, [#allocation6], 128, 128, 8
        $region16: #{tpu_custom_call.1} parent=11 // pred_fallthru
          _
        // Predicated region
        $region17: #{tpu_custom_call.1} parent=11 // pred_check
          %p191 = pneg %p90
        $region18: #{tpu_custom_call.1} parent=11 // pred_check_branch
          %193 = sbr.rel (%p191) target = $region20
        $region19: #{tpu_custom_call.1} parent=11 // pred_region
          %s195 = ssub.s32 2048, 2048
          %196 = vsyncadd [#allocation6], %s195
          %s197 = sshll.u32 [#allocation7], 4
          %s198 = int_to_ptr.vmem [resolvable:$true] %s197
          %203 = dma.hbm_to_vmem [thread:$0]  %s2, 2048, %s198, [#allocation6], 128, 128, 8
        $region20: #{tpu_custom_call.1} parent=11 // pred_fallthru
          _
        // Predicated region
        $region21: #{tpu_custom_call.1} parent=11 // pred_check
          %p204 = pneg %p111
        $region22: #{tpu_custom_call.1} parent=11 // pred_check_branch
          %206 = sbr.rel (%p204) target = $region24
        $region23: #{tpu_custom_call.1} parent=11 // pred_region
          _
        $region24: #{tpu_custom_call.1} parent=11 // pred_fallthru
          _
      $region12: #{tpu_custom_call.1} parent=5 // pred_fallthru
        _
      %p207 = scmp.lt.s32.totalorder %s22, 2
      // Predicated region
      $region25: #{tpu_custom_call.1} parent=5 // pred_check
        %p208 = pneg %p207
      $region26: #{tpu_custom_call.1} parent=5 // pred_check_branch
        %210 = sbr.rel (%p208) target = $region28
      $region27: #{tpu_custom_call.1} parent=5 // pred_region
        // Predicated region
        $region29: #{tpu_custom_call.1} parent=27 // pred_check
          %p211 = pneg %p42
        $region30: #{tpu_custom_call.1} parent=27 // pred_check_branch
          %213 = sbr.rel (%p211) target = $region32
        $region31: #{tpu_custom_call.1} parent=27 // pred_region
          %s214 = sand.u32 %s32, 1
          %s215 = scalar_lea.sflag [#allocation3], %s214
          %s216 = sand.u32 %s32, 1
          %s217 = smul.addr %s216, 128
          %s218 = scalar_lea.vmem [#allocation2], %s217
          %s219 = smul.u32 16, %s22
          %s221 = ssub.s32 2048, 2048
          %222 = vsyncadd %s215, %s221
          %s223 = smul.addr %s219, 2
          %s224 = smul.addr %s223, 64
          %s225 = scalar_lea.hbm %s0, %s224
          %s226 = sshll.u32 %s218, 4
          %s227 = int_to_ptr.vmem [resolvable:$true] %s226
          %232 = dma.hbm_to_vmem [thread:$0]  %s225, 2048, %s227, %s215, 128, 128, 8
        $region32: #{tpu_custom_call.1} parent=27 // pred_fallthru
          _
      $region28: #{tpu_custom_call.1} parent=5 // pred_fallthru
        _
      %p233 = scmp.le.s32.totalorder 1, %s22
      %p234 = scmp.lt.s32.totalorder %s22, 3
      %p235 = pnand %p233, %p234
      %p236 = pneg %p235
      // Predicated region
      $region33: #{tpu_custom_call.1} parent=5 // pred_check
        _
      $region34: #{tpu_custom_call.1} parent=5 // pred_check_branch
        %238 = sbr.rel (%p235) target = $region36
      $region35: #{tpu_custom_call.1} parent=5 // pred_region
        %s239 = ssub.s32 %s22, 1
        %s240 = sand.u32 %s35, 1
        %s241 = scalar_lea.sflag [#allocation3], %s240
        %s242 = sand.u32 %s35, 1
        %s243 = smul.addr %s242, 128
        %s244 = scalar_lea.vmem [#allocation2], %s243
        // Predicated region
        $region37: #{tpu_custom_call.1} parent=35 // pred_check
          %p245 = pneg %p48
        $region38: #{tpu_custom_call.1} parent=35 // pred_check_branch
          %247 = sbr.rel (%p245) target = $region40
        $region39: #{tpu_custom_call.1} parent=35 // pred_region
          %248 = dma.done %s241, 2048
        $region40: #{tpu_custom_call.1} parent=35 // pred_fallthru
          _
        // Predicated region
        $region41: #{tpu_custom_call.1} parent=35 // pred_check
          %p249 = pneg %p69
        $region42: #{tpu_custom_call.1} parent=35 // pred_check_branch
          %251 = sbr.rel (%p249) target = $region44
        $region43: #{tpu_custom_call.1} parent=35 // pred_region
          %252 = dma.done [#allocation6], 4096
        $region44: #{tpu_custom_call.1} parent=35 // pred_fallthru
          _
        // Predicated region
        $region45: #{tpu_custom_call.1} parent=35 // pred_check
          %p253 = pneg %p90
        $region46: #{tpu_custom_call.1} parent=35 // pred_check_branch
          %255 = sbr.rel (%p253) target = $region48
        $region47: #{tpu_custom_call.1} parent=35 // pred_region
          %256 = dma.done [#allocation6], 2048
        $region48: #{tpu_custom_call.1} parent=35 // pred_fallthru
          _
        %s257 = sand.u32 %s35, 1
        %s258 = scalar_lea.sflag [#allocation3], %s257
        %s259 = sand.u32 %s35, 1
        %s260 = smul.addr %s259, 128
        %s261 = scalar_lea.vmem [#allocation2], %s260
        %p262 = pneg %p48
        %p263 = pneg %p45
        %p264 = pneg %p69
        %p265 = pneg %p66
        %p266 = pneg %p90
        %p267 = pneg %p87
        %p268 = pneg %p111
        %p269 = pneg %p108
        %p270 = pneg %p137
        %p271 = pneg %p134
        %s272 = sand.u32 %s124, 1
        %s273 = scalar_lea.sflag [#allocation4], %s272
        %s274 = sand.u32 %s124, 1
        %s275 = smul.addr %s274, 128
        %s276 = scalar_lea.vmem [#allocation8], %s275
        %p277 = pneg %p163
        %p278 = pneg %p160
        %s279 = sand.u32 %s150, 1
        %s280 = scalar_lea.sflag [#allocation10], %s279
        %s281 = sand.u32 %s150, 1
        %s282 = smul.addr %s281, 8
        %s283 = scalar_lea.vmem [#allocation9], %s282
        %s284 = smul.u32 16, %s27
        %s285 = smul.u32 16, %s27
        %v286 = vld [vmem:[%s244] sm:$0xff]
        %v287 = vld [vmem:[%s244 + $0x8] sm:$0xff]
        %v288 = vld [vmem:[%s244 + $0x10] sm:$0xff]
        %v289 = vld [vmem:[%s244 + $0x18] sm:$0xff]
        %v290 = vld [vmem:[%s244 + $0x20] sm:$0xff]
        %v291 = vld [vmem:[%s244 + $0x28] sm:$0xff]
        %v292 = vld [vmem:[%s244 + $0x30] sm:$0xff]
        %v293 = vld [vmem:[%s244 + $0x38] sm:$0xff]
        %v294 = vld [vmem:[%s244 + $0x40] sm:$0xff]
        %v295 = vld [vmem:[%s244 + $0x48] sm:$0xff]
        %v296 = vld [vmem:[%s244 + $0x50] sm:$0xff]
        %v297 = vld [vmem:[%s244 + $0x58] sm:$0xff]
        %v298 = vld [vmem:[%s244 + $0x60] sm:$0xff]
        %v299 = vld [vmem:[%s244 + $0x68] sm:$0xff]
        %v300 = vld [vmem:[%s244 + $0x70] sm:$0xff]
        %v301 = vld [vmem:[%s244 + $0x78] sm:$0xff]
        %v302 = vunpack.c.l.bf16 %v286
        %v303 = vunpack.c.h.bf16 %v286
        %v304 = vunpack.c.l.bf16 %v287
        %v305 = vunpack.c.h.bf16 %v287
        %v306 = vunpack.c.l.bf16 %v288
        %v307 = vunpack.c.h.bf16 %v288
        %v308 = vunpack.c.l.bf16 %v289
        %v309 = vunpack.c.h.bf16 %v289
        %v310 = vunpack.c.l.bf16 %v290
        %v311 = vunpack.c.h.bf16 %v290
        %v312 = vunpack.c.l.bf16 %v291
        %v313 = vunpack.c.h.bf16 %v291
        %v314 = vunpack.c.l.bf16 %v292
        %v315 = vunpack.c.h.bf16 %v292
        %v316 = vunpack.c.l.bf16 %v293
        %v317 = vunpack.c.h.bf16 %v293
        %v318 = vunpack.c.l.bf16 %v294
        %v319 = vunpack.c.h.bf16 %v294
        %v320 = vunpack.c.l.bf16 %v295
        %v321 = vunpack.c.h.bf16 %v295
        %v322 = vunpack.c.l.bf16 %v296
        %v323 = vunpack.c.h.bf16 %v296
        %v324 = vunpack.c.l.bf16 %v297
        %v325 = vunpack.c.h.bf16 %v297
        %v326 = vunpack.c.l.bf16 %v298
        %v327 = vunpack.c.h.bf16 %v298
        %v328 = vunpack.c.l.bf16 %v299
        %v329 = vunpack.c.h.bf16 %v299
        %v330 = vunpack.c.l.bf16 %v300
        %v331 = vunpack.c.h.bf16 %v300
        %v332 = vunpack.c.l.bf16 %v301
        %v333 = vunpack.c.h.bf16 %v301
        %v334 = vld [vmem:[#allocation5] sm:$0xff]
        %v335 = vld [vmem:[#allocation5 + $0x8] sm:$0xff]
        %v336 = vld [vmem:[#allocation5 + $0x10] sm:$0xff]
        %v337 = vld [vmem:[#allocation5 + $0x18] sm:$0xff]
        %v338 = vld [vmem:[#allocation5 + $0x20] sm:$0xff]
        %v339 = vld [vmem:[#allocation5 + $0x28] sm:$0xff]
        %v340 = vld [vmem:[#allocation5 + $0x30] sm:$0xff]
        %v341 = vld [vmem:[#allocation5 + $0x38] sm:$0xff]
        %v342 = vld [vmem:[#allocation5 + $0x40] sm:$0xff]
        %v343 = vld [vmem:[#allocation5 + $0x48] sm:$0xff]
        %v344 = vld [vmem:[#allocation5 + $0x50] sm:$0xff]
        %v345 = vld [vmem:[#allocation5 + $0x58] sm:$0xff]
        %v346 = vld [vmem:[#allocation5 + $0x60] sm:$0xff]
        %v347 = vld [vmem:[#allocation5 + $0x68] sm:$0xff]
        %v348 = vld [vmem:[#allocation5 + $0x70] sm:$0xff]
        %v349 = vld [vmem:[#allocation5 + $0x78] sm:$0xff]
        %v350 = vld [vmem:[#allocation5 + $0x80] sm:$0xff]
        %v351 = vld [vmem:[#allocation5 + $0x88] sm:$0xff]
        %v352 = vld [vmem:[#allocation5 + $0x90] sm:$0xff]
        %v353 = vld [vmem:[#allocation5 + $0x98] sm:$0xff]
        %v354 = vld [vmem:[#allocation5 + $0xa0] sm:$0xff]
        %v355 = vld [vmem:[#allocation5 + $0xa8] sm:$0xff]
        %v356 = vld [vmem:[#allocation5 + $0xb0] sm:$0xff]
        %v357 = vld [vmem:[#allocation5 + $0xb8] sm:$0xff]
        %v358 = vld [vmem:[#allocation5 + $0xc0] sm:$0xff]
        %v359 = vld [vmem:[#allocation5 + $0xc8] sm:$0xff]
        %v360 = vld [vmem:[#allocation5 + $0xd0] sm:$0xff]
        %v361 = vld [vmem:[#allocation5 + $0xd8] sm:$0xff]
        %v362 = vld [vmem:[#allocation5 + $0xe0] sm:$0xff]
        %v363 = vld [vmem:[#allocation5 + $0xe8] sm:$0xff]
        %v364 = vld [vmem:[#allocation5 + $0xf0] sm:$0xff]
        %v365 = vld [vmem:[#allocation5 + $0xf8] sm:$0xff]
        %366 = vmatprep.subr.mxu0 0.0
        %367 = vmatpush1.msra.mxu0 %v349
        %368 = vmatprep.subr.mxu0 0.0
        %369 = vmatpush1.msra.mxu0 %v348
        %370 = vmatprep.subr.mxu0 0.0
        %371 = vmatpush1.msra.mxu0 %v347
        %372 = vmatprep.subr.mxu0 0.0
        %373 = vmatpush1.msra.mxu0 %v346
        %374 = vmatprep.subr.mxu0 0.0
        %375 = vmatpush1.msra.mxu0 %v345
        %376 = vmatprep.subr.mxu0 0.0
        %377 = vmatpush1.msra.mxu0 %v344
        %378 = vmatprep.subr.mxu0 0.0
        %379 = vmatpush1.msra.mxu0 %v343
        %380 = vmatprep.subr.mxu0 0.0
        %381 = vmatpush1.msra.mxu0 %v342
        %382 = vmatprep.subr.mxu0 0.0
        %383 = vmatpush1.msra.mxu0 %v341
        %384 = vmatprep.subr.mxu0 0.0
        %385 = vmatpush1.msra.mxu0 %v340
        %386 = vmatprep.subr.mxu0 0.0
        %387 = vmatpush1.msra.mxu0 %v339
        %388 = vmatprep.subr.mxu0 0.0
        %389 = vmatpush1.msra.mxu0 %v338
        %390 = vmatprep.subr.mxu0 0.0
        %391 = vmatpush1.msra.mxu0 %v337
        %392 = vmatprep.subr.mxu0 0.0
        %393 = vmatpush1.msra.mxu0 %v336
        %394 = vmatprep.subr.mxu0 0.0
        %395 = vmatpush1.msra.mxu0 %v335
        %396 = vmatprep.subr.mxu0 0.0
        %397 = vmatpush1.msra.mxu0 %v334
        %398 = vmatprep.subr.mxu0 0.0
        %399 = vmatpush2.msra.mxu0 %v365
        %400 = vmatprep.subr.mxu0 0.0
        %401 = vmatpush2.msra.mxu0 %v364
        %402 = vmatprep.subr.mxu0 0.0
        %403 = vmatpush2.msra.mxu0 %v363
        %404 = vmatprep.subr.mxu0 0.0
        %405 = vmatpush2.msra.mxu0 %v362
        %406 = vmatprep.subr.mxu0 0.0
        %407 = vmatpush2.msra.mxu0 %v361
        %408 = vmatprep.subr.mxu0 0.0
        %409 = vmatpush2.msra.mxu0 %v360
        %410 = vmatprep.subr.mxu0 0.0
        %411 = vmatpush2.msra.mxu0 %v359
        %412 = vmatprep.subr.mxu0 0.0
        %413 = vmatpush2.msra.mxu0 %v358
        %414 = vmatprep.subr.mxu0 0.0
        %415 = vmatpush2.msra.mxu0 %v357
        %416 = vmatprep.subr.mxu0 0.0
        %417 = vmatpush2.msra.mxu0 %v356
        %418 = vmatprep.subr.mxu0 0.0
        %419 = vmatpush2.msra.mxu0 %v355
        %420 = vmatprep.subr.mxu0 0.0
        %421 = vmatpush2.msra.mxu0 %v354
        %422 = vmatprep.subr.mxu0 0.0
        %423 = vmatpush2.msra.mxu0 %v353
        %424 = vmatprep.subr.mxu0 0.0
        %425 = vmatpush2.msra.mxu0 %v352
        %426 = vmatprep.subr.mxu0 0.0
        %427 = vmatpush2.msra.mxu0 %v351
        %428 = vmatprep.subr.mxu0 0.0
        %429 = vmatpush2.msra.mxu0 %v350
        %430 = vmatprep.mubr.f32.mxu0 %v303
        %431 = vmatmul.mubr.f32.gmra.mxu0 %v302
        %v432 = vpop.f32.mrf.mxu0
        %v433 = vadd.f32 0.0, %v432
        %v434 = vpop.f32.mrf.mxu0
        %435 = vmatprep.mubr.f32.mxu0 %v305
        %436 = vmatmul.mubr.f32.gmra.mxu0 %v304
        %v437 = vpop.f32.mrf.mxu0
        %v438 = vadd.f32 0.0, %v437
        %v439 = vpop.f32.mrf.mxu0
        %440 = vmatprep.mubr.f32.mxu0 %v307
        %441 = vmatmul.mubr.f32.gmra.mxu0 %v306
        %v442 = vpop.f32.mrf.mxu0
        %v443 = vadd.f32 0.0, %v442
        %v444 = vpop.f32.mrf.mxu0
        %445 = vmatprep.mubr.f32.mxu0 %v309
        %446 = vmatmul.mubr.f32.gmra.mxu0 %v308
        %v447 = vpop.f32.mrf.mxu0
        %v448 = vadd.f32 0.0, %v447
        %v449 = vpop.f32.mrf.mxu0
        %450 = vmatprep.mubr.f32.mxu0 %v311
        %451 = vmatmul.mubr.f32.gmra.mxu0 %v310
        %v452 = vpop.f32.mrf.mxu0
        %v453 = vadd.f32 0.0, %v452
        %v454 = vpop.f32.mrf.mxu0
        %455 = vmatprep.mubr.f32.mxu0 %v313
        %456 = vmatmul.mubr.f32.gmra.mxu0 %v312
        %v457 = vpop.f32.mrf.mxu0
        %v458 = vadd.f32 0.0, %v457
        %v459 = vpop.f32.mrf.mxu0
        %460 = vmatprep.mubr.f32.mxu0 %v315
        %461 = vmatmul.mubr.f32.gmra.mxu0 %v314
        %v462 = vpop.f32.mrf.mxu0
        %v463 = vadd.f32 0.0, %v462
        %v464 = vpop.f32.mrf.mxu0
        %465 = vmatprep.mubr.f32.mxu0 %v317
        %466 = vmatmul.mubr.f32.gmra.mxu0 %v316
        %v467 = vpop.f32.mrf.mxu0
        %v468 = vadd.f32 0.0, %v467
        %v469 = vpop.f32.mrf.mxu0
        %470 = vmatprep.mubr.f32.mxu0 %v319
        %471 = vmatmul.mubr.f32.gmra.mxu0 %v318
        %v472 = vpop.f32.mrf.mxu0
        %v473 = vadd.f32 0.0, %v472
        %v474 = vpop.f32.mrf.mxu0
        %475 = vmatprep.mubr.f32.mxu0 %v321
        %476 = vmatmul.mubr.f32.gmra.mxu0 %v320
        %v477 = vpop.f32.mrf.mxu0
        %v478 = vadd.f32 0.0, %v477
        %v479 = vpop.f32.mrf.mxu0
        %480 = vmatprep.mubr.f32.mxu0 %v323
        %481 = vmatmul.mubr.f32.gmra.mxu0 %v322
        %v482 = vpop.f32.mrf.mxu0
        %v483 = vadd.f32 0.0, %v482
        %v484 = vpop.f32.mrf.mxu0
        %485 = vmatprep.mubr.f32.mxu0 %v325
        %486 = vmatmul.mubr.f32.gmra.mxu0 %v324
        %v487 = vpop.f32.mrf.mxu0
        %v488 = vadd.f32 0.0, %v487
        %v489 = vpop.f32.mrf.mxu0
        %490 = vmatprep.mubr.f32.mxu0 %v327
        %491 = vmatmul.mubr.f32.gmra.mxu0 %v326
        %v492 = vpop.f32.mrf.mxu0
        %v493 = vadd.f32 0.0, %v492
        %v494 = vpop.f32.mrf.mxu0
        %495 = vmatprep.mubr.f32.mxu0 %v329
        %496 = vmatmul.mubr.f32.gmra.mxu0 %v328
        %v497 = vpop.f32.mrf.mxu0
        %v498 = vadd.f32 0.0, %v497
        %v499 = vpop.f32.mrf.mxu0
        %500 = vmatprep.mubr.f32.mxu0 %v331
        %501 = vmatmul.mubr.f32.gmra.mxu0 %v330
        %v502 = vpop.f32.mrf.mxu0
        %v503 = vadd.f32 0.0, %v502
        %v504 = vpop.f32.mrf.mxu0
        %505 = vmatprep.mubr.f32.mxu0 %v333
        %506 = vmatmul.mubr.f32.gmra.mxu0 %v332
        %v507 = vpop.f32.mrf.mxu0
        %v508 = vadd.f32 0.0, %v507
        %v509 = vpop.f32.mrf.mxu0
        %510 = vdwg.mxu0
        %v511 = vld [vmem:[#allocation7] sm:$0xff]
        %v512 = vld [vmem:[#allocation7 + $0x8] sm:$0xff]
        %v513 = vld [vmem:[#allocation7 + $0x10] sm:$0xff]
        %v514 = vld [vmem:[#allocation7 + $0x18] sm:$0xff]
        %v515 = vld [vmem:[#allocation7 + $0x20] sm:$0xff]
        %v516 = vld [vmem:[#allocation7 + $0x28] sm:$0xff]
        %v517 = vld [vmem:[#allocation7 + $0x30] sm:$0xff]
        %v518 = vld [vmem:[#allocation7 + $0x38] sm:$0xff]
        %v519 = vld [vmem:[#allocation7 + $0x40] sm:$0xff]
        %v520 = vld [vmem:[#allocation7 + $0x48] sm:$0xff]
        %v521 = vld [vmem:[#allocation7 + $0x50] sm:$0xff]
        %v522 = vld [vmem:[#allocation7 + $0x58] sm:$0xff]
        %v523 = vld [vmem:[#allocation7 + $0x60] sm:$0xff]
        %v524 = vld [vmem:[#allocation7 + $0x68] sm:$0xff]
        %v525 = vld [vmem:[#allocation7 + $0x70] sm:$0xff]
        %v526 = vld [vmem:[#allocation7 + $0x78] sm:$0xff]
        %v527 = vld [vmem:[%s3] sm:$0x1]
        %v529 = vlaneseq
        %v530 = vshrl.u32 %v529, 7
        %v531 = vsub.s32 0, %v530
        %v532 = vrot.slane %v527, %v531
        %534 = vmatprep.subr.mxu0 0.0
        %535 = vmatpush1.msra.mxu0 %v526
        %536 = vmatprep.subr.mxu0 0.0
        %537 = vmatpush1.msra.mxu0 %v525
        %538 = vmatprep.subr.mxu0 0.0
        %539 = vmatpush1.msra.mxu0 %v524
        %540 = vmatprep.subr.mxu0 0.0
        %541 = vmatpush1.msra.mxu0 %v523
        %542 = vmatprep.subr.mxu0 0.0
        %543 = vmatpush1.msra.mxu0 %v522
        %544 = vmatprep.subr.mxu0 0.0
        %545 = vmatpush1.msra.mxu0 %v521
        %546 = vmatprep.subr.mxu0 0.0
        %547 = vmatpush1.msra.mxu0 %v520
        %548 = vmatprep.subr.mxu0 0.0
        %549 = vmatpush1.msra.mxu0 %v519
        %550 = vmatprep.subr.mxu0 0.0
        %551 = vmatpush1.msra.mxu0 %v518
        %552 = vmatprep.subr.mxu0 0.0
        %553 = vmatpush1.msra.mxu0 %v517
        %554 = vmatprep.subr.mxu0 0.0
        %555 = vmatpush1.msra.mxu0 %v516
        %556 = vmatprep.subr.mxu0 0.0
        %557 = vmatpush1.msra.mxu0 %v515
        %558 = vmatprep.subr.mxu0 0.0
        %559 = vmatpush1.msra.mxu0 %v514
        %560 = vmatprep.subr.mxu0 0.0
        %561 = vmatpush1.msra.mxu0 %v513
        %562 = vmatprep.subr.mxu0 0.0
        %563 = vmatpush1.msra.mxu0 %v512
        %564 = vmatprep.subr.mxu0 0.0
        %565 = vmatpush1.msra.mxu0 %v511
        %566 = vmatprep.subr.mxu0 0.0
        %567 = vmatpush2.msra.mxu0 0.0
        %568 = vmatprep.subr.mxu0 0.0
        %569 = vmatpush2.msra.mxu0 0.0
        %570 = vmatprep.subr.mxu0 0.0
        %571 = vmatpush2.msra.mxu0 0.0
        %572 = vmatprep.subr.mxu0 0.0
        %573 = vmatpush2.msra.mxu0 0.0
        %574 = vmatprep.subr.mxu0 0.0
        %575 = vmatpush2.msra.mxu0 0.0
        %576 = vmatprep.subr.mxu0 0.0
        %577 = vmatpush2.msra.mxu0 0.0
        %578 = vmatprep.subr.mxu0 0.0
        %579 = vmatpush2.msra.mxu0 0.0
        %580 = vmatprep.subr.mxu0 0.0
        %581 = vmatpush2.msra.mxu0 0.0
        %582 = vmatprep.subr.mxu0 0.0
        %583 = vmatpush2.msra.mxu0 0.0
        %584 = vmatprep.subr.mxu0 0.0
        %585 = vmatpush2.msra.mxu0 0.0
        %586 = vmatprep.subr.mxu0 0.0
        %587 = vmatpush2.msra.mxu0 0.0
        %588 = vmatprep.subr.mxu0 0.0
        %589 = vmatpush2.msra.mxu0 0.0
        %590 = vmatprep.subr.mxu0 0.0
        %591 = vmatpush2.msra.mxu0 0.0
        %592 = vmatprep.subr.mxu0 0.0
        %593 = vmatpush2.msra.mxu0 0.0
        %594 = vmatprep.subr.mxu0 0.0
        %595 = vmatpush2.msra.mxu0 0.0
        %596 = vmatprep.subr.mxu0 0.0
        %597 = vmatpush2.msra.mxu0 0.0
        %598 = vmatprep.mubr.f32.mxu0 0.0
        %599 = vmatmul.mubr.f32.gmra.mxu0 %v433
        %v600 = vpop.f32.mrf.mxu0
        %v601 = vadd.f32 %v532, %v600
        %v602 = vpop.f32.mrf.mxu0
        %603 = vmatprep.mubr.f32.mxu0 0.0
        %604 = vmatmul.mubr.f32.gmra.mxu0 %v438
        %v605 = vpop.f32.mrf.mxu0
        %v606 = vadd.f32 %v532, %v605
        %v607 = vpop.f32.mrf.mxu0
        %608 = vmatprep.mubr.f32.mxu0 0.0
        %609 = vmatmul.mubr.f32.gmra.mxu0 %v443
        %v610 = vpop.f32.mrf.mxu0
        %v611 = vadd.f32 %v532, %v610
        %v612 = vpop.f32.mrf.mxu0
        %613 = vmatprep.mubr.f32.mxu0 0.0
        %614 = vmatmul.mubr.f32.gmra.mxu0 %v448
        %v615 = vpop.f32.mrf.mxu0
        %v616 = vadd.f32 %v532, %v615
        %v617 = vpop.f32.mrf.mxu0
        %618 = vmatprep.mubr.f32.mxu0 0.0
        %619 = vmatmul.mubr.f32.gmra.mxu0 %v453
        %v620 = vpop.f32.mrf.mxu0
        %v621 = vadd.f32 %v532, %v620
        %v622 = vpop.f32.mrf.mxu0
        %623 = vmatprep.mubr.f32.mxu0 0.0
        %624 = vmatmul.mubr.f32.gmra.mxu0 %v458
        %v625 = vpop.f32.mrf.mxu0
        %v626 = vadd.f32 %v532, %v625
        %v627 = vpop.f32.mrf.mxu0
        %628 = vmatprep.mubr.f32.mxu0 0.0
        %629 = vmatmul.mubr.f32.gmra.mxu0 %v463
        %v630 = vpop.f32.mrf.mxu0
        %v631 = vadd.f32 %v532, %v630
        %v632 = vpop.f32.mrf.mxu0
        %633 = vmatprep.mubr.f32.mxu0 0.0
        %634 = vmatmul.mubr.f32.gmra.mxu0 %v468
        %v635 = vpop.f32.mrf.mxu0
        %v636 = vadd.f32 %v532, %v635
        %v637 = vpop.f32.mrf.mxu0
        %638 = vmatprep.mubr.f32.mxu0 0.0
        %639 = vmatmul.mubr.f32.gmra.mxu0 %v473
        %v640 = vpop.f32.mrf.mxu0
        %v641 = vadd.f32 %v532, %v640
        %v642 = vpop.f32.mrf.mxu0
        %643 = vmatprep.mubr.f32.mxu0 0.0
        %644 = vmatmul.mubr.f32.gmra.mxu0 %v478
        %v645 = vpop.f32.mrf.mxu0
        %v646 = vadd.f32 %v532, %v645
        %v647 = vpop.f32.mrf.mxu0
        %648 = vmatprep.mubr.f32.mxu0 0.0
        %649 = vmatmul.mubr.f32.gmra.mxu0 %v483
        %v650 = vpop.f32.mrf.mxu0
        %v651 = vadd.f32 %v532, %v650
        %v652 = vpop.f32.mrf.mxu0
        %653 = vmatprep.mubr.f32.mxu0 0.0
        %654 = vmatmul.mubr.f32.gmra.mxu0 %v488
        %v655 = vpop.f32.mrf.mxu0
        %v656 = vadd.f32 %v532, %v655
        %v657 = vpop.f32.mrf.mxu0
        %658 = vmatprep.mubr.f32.mxu0 0.0
        %659 = vmatmul.mubr.f32.gmra.mxu0 %v493
        %v660 = vpop.f32.mrf.mxu0
        %v661 = vadd.f32 %v532, %v660
        %v662 = vpop.f32.mrf.mxu0
        %663 = vmatprep.mubr.f32.mxu0 0.0
        %664 = vmatmul.mubr.f32.gmra.mxu0 %v498
        %v665 = vpop.f32.mrf.mxu0
        %v666 = vadd.f32 %v532, %v665
        %v667 = vpop.f32.mrf.mxu0
        %668 = vmatprep.mubr.f32.mxu0 0.0
        %669 = vmatmul.mubr.f32.gmra.mxu0 %v503
        %v670 = vpop.f32.mrf.mxu0
        %v671 = vadd.f32 %v532, %v670
        %v672 = vpop.f32.mrf.mxu0
        %673 = vmatprep.mubr.f32.mxu0 0.0
        %674 = vmatmul.mubr.f32.gmra.mxu0 %v508
        %v675 = vpop.f32.mrf.mxu0
        %v676 = vadd.f32 %v532, %v675
        %v677 = vpop.f32.mrf.mxu0
        %678 = vdwg.mxu0
        %v679 = vmax.f32 %v601, 0.0
        %v680 = vmax.f32 %v606, 0.0
        %v681 = vmax.f32 %v611, 0.0
        %v682 = vmax.f32 %v616, 0.0
        %v683 = vmax.f32 %v621, 0.0
        %v684 = vmax.f32 %v626, 0.0
        %v685 = vmax.f32 %v631, 0.0
        %v686 = vmax.f32 %v636, 0.0
        %v687 = vmax.f32 %v641, 0.0
        %v688 = vmax.f32 %v646, 0.0
        %v689 = vmax.f32 %v651, 0.0
        %v690 = vmax.f32 %v656, 0.0
        %v691 = vmax.f32 %v661, 0.0
        %v692 = vmax.f32 %v666, 0.0
        %v693 = vmax.f32 %v671, 0.0
        %v694 = vmax.f32 %v676, 0.0
        %695 = vst [vmem:[%s276] sm:$0xff] %v679
        %696 = vst [vmem:[%s276 + $0x8] sm:$0xff] %v680
        %697 = vst [vmem:[%s276 + $0x10] sm:$0xff] %v681
        %698 = vst [vmem:[%s276 + $0x18] sm:$0xff] %v682
        %699 = vst [vmem:[%s276 + $0x20] sm:$0xff] %v683
        %700 = vst [vmem:[%s276 + $0x28] sm:$0xff] %v684
        %701 = vst [vmem:[%s276 + $0x30] sm:$0xff] %v685
        %702 = vst [vmem:[%s276 + $0x38] sm:$0xff] %v686
        %703 = vst [vmem:[%s276 + $0x40] sm:$0xff] %v687
        %704 = vst [vmem:[%s276 + $0x48] sm:$0xff] %v688
        %705 = vst [vmem:[%s276 + $0x50] sm:$0xff] %v689
        %706 = vst [vmem:[%s276 + $0x58] sm:$0xff] %v690
        %707 = vst [vmem:[%s276 + $0x60] sm:$0xff] %v691
        %708 = vst [vmem:[%s276 + $0x68] sm:$0xff] %v692
        %709 = vst [vmem:[%s276 + $0x70] sm:$0xff] %v693
        %710 = vst [vmem:[%s276 + $0x78] sm:$0xff] %v694
        %v711 = vlaneseq
        %v712 = vshrl.u32 %v711, 7
        %v713 = vadd.s32 %v712, 8
        %v714 = vadd.s32 %v712, 16
        %v715 = vadd.s32 %v712, 24
        %v716 = vadd.s32 %v712, 32
        %v717 = vadd.s32 %v712, 40
        %v718 = vadd.s32 %v712, 48
        %v719 = vadd.s32 %v712, 56
        %v720 = vadd.s32 %v712, 64
        %v721 = vadd.s32 %v712, 72
        %v722 = vadd.s32 %v712, 80
        %v723 = vadd.s32 %v712, 88
        %v724 = vadd.s32 %v712, 96
        %v725 = vadd.s32 %v712, 104
        %v726 = vadd.s32 %v712, 112
        %v727 = vadd.s32 %v712, 120
        %s728 = smul.u32 %s27, 128
        %v729 = vstv %s728
        %v730 = vadd.s32 %v712, %v729
        %v731 = vadd.s32 %v713, %v729
        %v732 = vadd.s32 %v714, %v729
        %v733 = vadd.s32 %v715, %v729
        %v734 = vadd.s32 %v716, %v729
        %v735 = vadd.s32 %v717, %v729
        %v736 = vadd.s32 %v718, %v729
        %v737 = vadd.s32 %v719, %v729
        %v738 = vadd.s32 %v720, %v729
        %v739 = vadd.s32 %v721, %v729
        %v740 = vadd.s32 %v722, %v729
        %v741 = vadd.s32 %v723, %v729
        %v742 = vadd.s32 %v724, %v729
        %v743 = vadd.s32 %v725, %v729
        %v744 = vadd.s32 %v726, %v729
        %v745 = vadd.s32 %v727, %v729
        %vm746 = vcmp.lt.s32.totalorder %v730, 256
        %vm747 = vcmp.lt.s32.totalorder %v731, 256
        %vm748 = vcmp.lt.s32.totalorder %v732, 256
        %vm749 = vcmp.lt.s32.totalorder %v733, 256
        %vm750 = vcmp.lt.s32.totalorder %v734, 256
        %vm751 = vcmp.lt.s32.totalorder %v735, 256
        %vm752 = vcmp.lt.s32.totalorder %v736, 256
        %vm753 = vcmp.lt.s32.totalorder %v737, 256
        %vm754 = vcmp.lt.s32.totalorder %v738, 256
        %vm755 = vcmp.lt.s32.totalorder %v739, 256
        %vm756 = vcmp.lt.s32.totalorder %v740, 256
        %vm757 = vcmp.lt.s32.totalorder %v741, 256
        %vm758 = vcmp.lt.s32.totalorder %v742, 256
        %vm759 = vcmp.lt.s32.totalorder %v743, 256
        %vm760 = vcmp.lt.s32.totalorder %v744, 256
        %vm761 = vcmp.lt.s32.totalorder %v745, 256
        %v762 = vsel %vm746, %v679, 0.0
        %v763 = vsel %vm747, %v680, 0.0
        %v764 = vsel %vm748, %v681, 0.0
        %v765 = vsel %vm749, %v682, 0.0
        %v766 = vsel %vm750, %v683, 0.0
        %v767 = vsel %vm751, %v684, 0.0
        %v768 = vsel %vm752, %v685, 0.0
        %v769 = vsel %vm753, %v686, 0.0
        %v770 = vsel %vm754, %v687, 0.0
        %v771 = vsel %vm755, %v688, 0.0
        %v772 = vsel %vm756, %v689, 0.0
        %v773 = vsel %vm757, %v690, 0.0
        %v774 = vsel %vm758, %v691, 0.0
        %v775 = vsel %vm759, %v692, 0.0
        %v776 = vsel %vm760, %v693, 0.0
        %v777 = vsel %vm761, %v694, 0.0
        %v778 = vadd.f32 %v762, %v763
        %v779 = vadd.f32 %v778, %v764
        %v780 = vadd.f32 %v779, %v765
        %v781 = vadd.f32 %v780, %v766
        %v782 = vadd.f32 %v781, %v767
        %v783 = vadd.f32 %v782, %v768
        %v784 = vadd.f32 %v783, %v769
        %v785 = vadd.f32 %v784, %v770
        %v786 = vadd.f32 %v785, %v771
        %v787 = vadd.f32 %v786, %v772
        %v788 = vadd.f32 %v787, %v773
        %v789 = vadd.f32 %v788, %v774
        %v790 = vadd.f32 %v789, %v775
        %v791 = vadd.f32 %v790, %v776
        %v792 = vadd.f32 %v791, %v777
        %v793 = vrot.slane %v792, 4
        %v794 = vadd.f32 %v792, %v793
        %v795 = vrot.slane %v794, 2
        %v796 = vadd.f32 %v794, %v795
        %v797 = vrot.slane %v796, 1
        %v798 = vadd.f32 %v796, %v797
        %v799 = vmul.f32 %v762, %v762
        %v800 = vmul.f32 %v763, %v763
        %v801 = vmul.f32 %v764, %v764
        %v802 = vmul.f32 %v765, %v765
        %v803 = vmul.f32 %v766, %v766
        %v804 = vmul.f32 %v767, %v767
        %v805 = vmul.f32 %v768, %v768
        %v806 = vmul.f32 %v769, %v769
        %v807 = vmul.f32 %v770, %v770
        %v808 = vmul.f32 %v771, %v771
        %v809 = vmul.f32 %v772, %v772
        %v810 = vmul.f32 %v773, %v773
        %v811 = vmul.f32 %v774, %v774
        %v812 = vmul.f32 %v775, %v775
        %v813 = vmul.f32 %v776, %v776
        %v814 = vmul.f32 %v777, %v777
        %v815 = vadd.f32 %v799, %v800
        %v816 = vadd.f32 %v815, %v801
        %v817 = vadd.f32 %v816, %v802
        %v818 = vadd.f32 %v817, %v803
        %v819 = vadd.f32 %v818, %v804
        %v820 = vadd.f32 %v819, %v805
        %v821 = vadd.f32 %v820, %v806
        %v822 = vadd.f32 %v821, %v807
        %v823 = vadd.f32 %v822, %v808
        %v824 = vadd.f32 %v823, %v809
        %v825 = vadd.f32 %v824, %v810
        %v826 = vadd.f32 %v825, %v811
        %v827 = vadd.f32 %v826, %v812
        %v828 = vadd.f32 %v827, %v813
        %v829 = vadd.f32 %v828, %v814
        %v830 = vrot.slane %v829, 4
        %v831 = vadd.f32 %v829, %v830
        %v832 = vrot.slane %v831, 2
        %v833 = vadd.f32 %v831, %v832
        %v834 = vrot.slane %v833, 1
        %v835 = vadd.f32 %v833, %v834
        %vm836 = vcmp.eq.s32.totalorder %v712, 0
        %vm837 = vcmp.eq.s32.totalorder %v712, 1
        %v838 = vsel %vm837, %v835, 0.0
        %v839 = vsel %vm836, %v798, %v838
        %840 = vst [vmem:[%s283] sm:$0xff] %v839
        %s841 = sand.u32 %s124, 1
        %s842 = scalar_lea.sflag [#allocation4], %s841
        %s843 = sand.u32 %s124, 1
        %s844 = smul.addr %s843, 128
        %s845 = scalar_lea.vmem [#allocation8], %s844
        %s846 = sand.u32 %s150, 1
        %s847 = scalar_lea.sflag [#allocation10], %s846
        %s848 = sand.u32 %s150, 1
        %s849 = smul.addr %s848, 8
        %s850 = scalar_lea.vmem [#allocation9], %s849
        // Predicated region
        $region49: #{tpu_custom_call.1} parent=35 // pred_check
          %p851 = pneg %p134
        $region50: #{tpu_custom_call.1} parent=35 // pred_check_branch
          %853 = sbr.rel (%p851) target = $region52
        $region51: #{tpu_custom_call.1} parent=35 // pred_region
          %s854 = smul.u32 16, %s27
          %s856 = ssub.s32 2048, 2048
          %857 = vsyncadd %s842, %s856
          %s858 = smul.addr %s854, 128
          %s859 = scalar_lea.hbm %s4, %s858
          %s860 = sshll.u32 %s845, 4
          %s861 = int_to_ptr.vmem [resolvable:$true] %s860
          %866 = dma.vmem_to_hbm [thread:$0]  %s861, 2048, %s859, %s842, 128, 128, 8
        $region52: #{tpu_custom_call.1} parent=35 // pred_fallthru
          _
        // Predicated region
        $region53: #{tpu_custom_call.1} parent=35 // pred_check
          %p867 = pneg %p160
        $region54: #{tpu_custom_call.1} parent=35 // pred_check_branch
          %869 = sbr.rel (%p867) target = $region56
        $region55: #{tpu_custom_call.1} parent=35 // pred_region
          %s871 = ssub.s32 128, 128
          %872 = vsyncadd %s847, %s871
          %s873 = smul.addr %s27, 128
          %s874 = scalar_lea.hbm %s5, %s873
          %s876 = sshll.u32 %s850, 4
          %s877 = int_to_ptr.vmem [resolvable:$true] %s876
          %879 = dma.vmem_to_hbm [thread:$0]  %s877, 128, %s874, %s847
        $region56: #{tpu_custom_call.1} parent=35 // pred_fallthru
          _
      $region36: #{tpu_custom_call.1} parent=5 // pred_fallthru
        _
      %p880 = scmp.le.s32.totalorder 2, %s22
      // Predicated region
      $region57: #{tpu_custom_call.1} parent=5 // pred_check
        %p881 = pneg %p880
      $region58: #{tpu_custom_call.1} parent=5 // pred_check_branch
        %883 = sbr.rel (%p881) target = $region60
      $region59: #{tpu_custom_call.1} parent=5 // pred_region
        %s884 = ssub.s32 %s22, 2
        // Predicated region
        $region61: #{tpu_custom_call.1} parent=59 // pred_check
          %p885 = pneg %p140
        $region62: #{tpu_custom_call.1} parent=59 // pred_check_branch
          %887 = sbr.rel (%p885) target = $region64
        $region63: #{tpu_custom_call.1} parent=59 // pred_region
          %s888 = sand.u32 %s125, 1
          %s889 = scalar_lea.sflag [#allocation4], %s888
          %s890 = sand.u32 %s125, 1
          %s891 = smul.addr %s890, 128
          %s892 = scalar_lea.vmem [#allocation8], %s891
          %893 = dma.done %s889, 2048
        $region64: #{tpu_custom_call.1} parent=59 // pred_fallthru
          _
        // Predicated region
        $region65: #{tpu_custom_call.1} parent=59 // pred_check
          %p894 = pneg %p166
        $region66: #{tpu_custom_call.1} parent=59 // pred_check_branch
          %896 = sbr.rel (%p894) target = $region68
        $region67: #{tpu_custom_call.1} parent=59 // pred_region
          %s897 = sand.u32 %s151, 1
          %s898 = scalar_lea.sflag [#allocation10], %s897
          %s899 = sand.u32 %s151, 1
          %s900 = smul.addr %s899, 8
          %s901 = scalar_lea.vmem [#allocation9], %s900
          %902 = dma.done %s898, 128
        $region68: #{tpu_custom_call.1} parent=59 // pred_fallthru
          _
      $region60: #{tpu_custom_call.1} parent=5 // pred_fallthru
        _
    $region6: #{tpu_custom_call.1} parent=1 // loop_footer
      %s26 = sadd.s32 1, %s22
    $region7: #{tpu_custom_call.1} parent=1 // loop_footer_branch
      %21 = sbr.rel target = $region3
    $region8: #{tpu_custom_call.1} parent=1 // loop_exit
      _
    %903 = vsyncpa [#allocation3], 1
    %s904 = scalar_lea.sflag [#allocation3], 1
    %905 = vsyncpa %s904, 1
    %906 = vsyncpa [#allocation6], 1
    %907 = vsyncpa [#allocation4], 1
    %s908 = scalar_lea.sflag [#allocation4], 1
    %909 = vsyncpa %s908, 1
    %910 = vsyncpa [#allocation10], 1
    %s911 = scalar_lea.sflag [#allocation10], 1
    %912 = vsyncpa %s911, 1

</llo_original>
